<compile_context>
chip_gen: v6e
topology: v6e:2x2x1
jax: 0.10.0
libtpu: 0.0.40
codegen_flags: <defaults>
</compile_context>

<pallas_src>
import functools

import jax
import jax.numpy as jnp
from jax.experimental import pallas as pl
from jax.experimental.pallas import tpu as pltpu


def _attention_kernel(hs_ref, wt_ref, b_ref, ctx_ref, out_ref, attn_ref):
    h = hs_ref[...]          # (TB, L, H)  matmul dtype
    wt = wt_ref[...]         # (H, H)      matmul dtype (== W^T of nn.Linear)
    bias = b_ref[...]        # (1, H)      f32
    ctx = ctx_ref[...]       # (1, H)      f32

    tb, L, H = h.shape

    # ---- Linear: single large MXU matmul (f32 accumulate) + bias + tanh ----
    h2 = h.reshape(tb * L, H)
    s = jnp.dot(h2, wt, preferred_element_type=jnp.float32) + bias   # (TB*L, H) f32
    s = jnp.tanh(s)

    # ---- context-vector reduce: VPU multiply + XLU lane reduce (f32) -------
    scores = jnp.sum(s.reshape(tb, L, H) * ctx[None, :, :], axis=-1)  # (TB, L) f32

    # ---- softmax over the sequence axis (f32) ------------------------------
    m = jnp.max(scores, axis=1, keepdims=True)
    e = jnp.exp(scores - m)
    w = e / jnp.sum(e, axis=1, keepdims=True)                         # (TB, L) f32

    # ---- weighted sum over L on the MXU: (TB,1,L) @ (TB,L,H) -> (TB,1,H) ---
    wsum = jnp.einsum(
        "bql,blh->bqh",
        w[:, None, :].astype(h.dtype),
        h,
        preferred_element_type=jnp.float32,
    )[:, 0, :]                                                        # (TB, H) f32

    out_ref[...] = wsum.astype(out_ref.dtype)
    attn_ref[...] = w.astype(attn_ref.dtype)


def _pick_block_b(B, requested):
    """Largest TB <= requested that divides B and satisfies TPU sublane tiling
    for the (TB, H)/(TB, L) output blocks (TB == B, or TB a multiple of 8)."""
    tb = max(1, min(int(requested), B))
    if tb >= B:
        return B
    tb = (tb // 8) * 8
    while tb >= 8:
        if B % tb == 0:
            return tb
        tb -= 8
    return B   # fall back to the whole batch in one tile


@functools.partial(jax.jit, static_argnames=("block_b", "matmul_dtype", "vmem_limit_bytes"))
def additive_attention(hidden_states, W, b, context_vector, *,
                       block_b=None, matmul_dtype=None, vmem_limit_bytes=None):
    """hidden_states: (B, L, H); W: (H, H) nn.Linear weight; b: (H,); context_vector: (H,)."""
    B, L, H = hidden_states.shape
    out_dtype = hidden_states.dtype
    mm_dtype = jnp.dtype(matmul_dtype) if matmul_dtype is not None else hidden_states.dtype

    # Cast MXU operands once in the wrapper (also halves HBM traffic for bf16).
    hs = hidden_states.astype(mm_dtype)
    wt = W.T.astype(mm_dtype)                       # kernel computes x @ W^T
    b2 = b.reshape(1, H).astype(jnp.float32)
    ctx2 = context_vector.reshape(1, H).astype(jnp.float32)

    if block_b is None:
        # Keep the f32 (TB, L, H) working intermediate around ~2 MiB so that
        # double-buffered inputs + intermediates fit the scoped VMEM limit on
        # every generation (v7x has only 64 MiB physical / 32 MiB scoped).
        bytes_per_batch_row = L * H * 4
        block_b = max(1, (2 * 1024 * 1024) // max(bytes_per_batch_row, 1))
    tb = _pick_block_b(B, block_b)
    grid = (B // tb,)

    out_shapes = (
        jax.ShapeDtypeStruct((B, H), out_dtype),    # weighted_sum
        jax.ShapeDtypeStruct((B, L), out_dtype),    # attn_weights
    )

    cp_kwargs = dict(dimension_semantics=("parallel",))
    if vmem_limit_bytes is not None:
        cp_kwargs["vmem_limit_bytes"] = vmem_limit_bytes

    return pl.pallas_call(
        _attention_kernel,
        out_shape=out_shapes,
        grid_spec=pltpu.PrefetchScalarGridSpec(
            num_scalar_prefetch=0,
            grid=grid,
            in_specs=[
                pl.BlockSpec((tb, L, H), lambda i: (i, 0, 0)),   # hidden_states tile
                pl.BlockSpec((H, H), lambda i: (0, 0)),          # W^T   (resident)
                pl.BlockSpec((1, H), lambda i: (0, 0)),          # bias  (resident)
                pl.BlockSpec((1, H), lambda i: (0, 0)),          # ctx   (resident)
            ],
            out_specs=[
                pl.BlockSpec((tb, H), lambda i: (i, 0)),
                pl.BlockSpec((tb, L), lambda i: (i, 0)),
            ],
        ),
        compiler_params=pltpu.CompilerParams(**cp_kwargs),
    )(hs, wt, b2, ctx2)


def _reference(hidden_states, W, b, context_vector):
    s = jnp.tanh(jnp.einsum("blh,kh->blk", hidden_states, W) + b)
    scores = jnp.einsum("blh,h->bl", s, context_vector)
    w = jax.nn.softmax(scores, axis=1)
    out = jnp.einsum("bl,blh->bh", w, hidden_states)
    return out, w


def _make_inputs(B, L, H, key):
    k_x, k_w, k_b, k_c = jax.random.split(key, 4)
    hidden_states = jax.random.normal(k_x, (B, L, H), dtype=jnp.float32)
    # nn.Linear(hidden_dim, hidden_dim): weight (H, H), bias (H,)
    W = jax.random.normal(k_w, (H, H), dtype=jnp.float32) * (1.0 / jnp.sqrt(H))
    b = jax.random.normal(k_b, (H,), dtype=jnp.float32) * 0.1
    # nn.Parameter(torch.randn(hidden_dim))
    context_vector = jax.random.normal(k_c, (H,), dtype=jnp.float32)
    return hidden_states, W, b, context_vector


if __name__ == "__main__":
    # ---- Test 1: small shapes implied by the module (B=2, L=8, H=32), f32 --
    hs, W, b, ctx = _make_inputs(2, 8, 32, jax.random.PRNGKey(0))
    out, w = additive_attention(hs, W, b, ctx)
    out = jax.block_until_ready(out)
    w = jax.block_until_ready(w)
    ref_out, ref_w = _reference(hs, W, b, ctx)
    assert out.shape == (2, 32) and w.shape == (2, 8)
    assert jnp.allclose(out, ref_out, atol=1e-4, rtol=1e-4)
    assert jnp.allclose(w, ref_w, atol=1e-4, rtol=1e-4)

    # ---- Test 2: batch-tiled grid (multiple pipelined grid steps), f32 -----
    hs2, W2, b2, ctx2 = _make_inputs(16, 64, 128, jax.random.PRNGKey(1))
    out2, w2 = additive_attention(hs2, W2, b2, ctx2, block_b=8)
    out2 = jax.block_until_ready(out2)
    w2 = jax.block_until_ready(w2)
    ref_out2, ref_w2 = _reference(hs2, W2, b2, ctx2)
    assert out2.shape == (16, 128) and w2.shape == (16, 64)
    assert jnp.allclose(out2, ref_out2, atol=5e-4, rtol=5e-4)
    assert jnp.allclose(w2, ref_w2, atol=5e-4, rtol=5e-4)

    # ---- Test 3: bf16 MXU operands (f32 accumulation / f32 softmax) --------
    out3, w3 = additive_attention(hs2, W2, b2, ctx2, block_b=8,
                                  matmul_dtype=jnp.bfloat16)
    out3 = jax.block_until_ready(out3)
    w3 = jax.block_until_ready(w3)
    # Compare against a reference computed on bf16-rounded operands so the
    # check isolates the kernel (not the intrinsic bf16 rounding of inputs).
    hs2_bf = hs2.astype(jnp.bfloat16).astype(jnp.float32)
    W2_bf = W2.astype(jnp.bfloat16).astype(jnp.float32)
    ref_out3, ref_w3 = _reference(hs2_bf, W2_bf, b2, ctx2)
    assert jnp.allclose(out3, ref_out3, atol=2e-2, rtol=2e-2)
    assert jnp.allclose(w3, ref_w3, atol=2e-2, rtol=2e-2)

    print("KERNEL_OK")
</pallas_src>

<mosaic_0001>
module attributes {stable_mosaic.version = 11 : i64} {
  func.func @_attention_kernel(%arg0: i32, %arg1: memref<2x8x32xf32, #tpu.memory_space<vmem>>, %arg2: memref<32x32xf32, #tpu.memory_space<vmem>>, %arg3: memref<1x32xf32, #tpu.memory_space<vmem>>, %arg4: memref<1x32xf32, #tpu.memory_space<vmem>>, %arg5: memref<2x32xf32, #tpu.memory_space<vmem>>, %arg6: memref<2x8xf32, #tpu.memory_space<vmem>>) attributes {dimension_semantics = [#tpu.dimension_semantics<parallel>], iteration_bounds = array<i64: 1>, scalar_prefetch = 0 : i64, scratch_operands = 0 : i64, tpu.core_type = #tpu.core_type<tc>, window_params = [{transform_indices = @transform_0, window_bounds = array<i64: 2, 8, 32>}, {pipeline_mode = #tpu.pipeline_mode<synchronous>, transform_indices = @transform_1, window_bounds = array<i64: 32, 32>}, {pipeline_mode = #tpu.pipeline_mode<synchronous>, transform_indices = @transform_2, window_bounds = array<i64: 1, 32>}, {pipeline_mode = #tpu.pipeline_mode<synchronous>, transform_indices = @transform_3, window_bounds = array<i64: 1, 32>}, {transform_indices = @transform_4, window_bounds = array<i64: 2, 32>}, {transform_indices = @transform_5, window_bounds = array<i64: 2, 8>}]} {
    %c0 = arith.constant 0 : index
    %c0_0 = arith.constant 0 : index
    %c0_1 = arith.constant 0 : index
    %0 = vector.load %arg1[%c0, %c0_0, %c0_1] : memref<2x8x32xf32, #tpu.memory_space<vmem>>, vector<2x8x32xf32>
    %c0_2 = arith.constant 0 : index
    %c0_3 = arith.constant 0 : index
    %1 = vector.load %arg2[%c0_2, %c0_3] : memref<32x32xf32, #tpu.memory_space<vmem>>, vector<32x32xf32>
    %c0_4 = arith.constant 0 : index
    %c0_5 = arith.constant 0 : index
    %2 = vector.load %arg3[%c0_4, %c0_5] : memref<1x32xf32, #tpu.memory_space<vmem>>, vector<1x32xf32>
    %c0_6 = arith.constant 0 : index
    %c0_7 = arith.constant 0 : index
    %3 = vector.load %arg4[%c0_6, %c0_7] : memref<1x32xf32, #tpu.memory_space<vmem>>, vector<1x32xf32>
    %4 = vector.shape_cast %0 : vector<2x8x32xf32> to vector<16x32xf32>
    %cst = arith.constant dense<0.000000e+00> : vector<16x32xf32>
    %5 = tpu.matmul %4, %1, %cst {dimension_numbers = #tpu.dot_dimension_numbers<[1], [0], [0], [1], [0, 0, 1, 1], [], []>} : vector<16x32xf32>, vector<32x32xf32>, vector<16x32xf32> -> vector<16x32xf32>
    %6 = vector.broadcast %2 : vector<1x32xf32> to vector<16x32xf32>
    %7 = arith.addf %5, %6 : vector<16x32xf32>
    %8 = math.tanh %7 : vector<16x32xf32>
    %9 = vector.shape_cast %8 : vector<16x32xf32> to vector<2x8x32xf32>
    %10 = vector.shape_cast %3 : vector<1x32xf32> to vector<1x1x32xf32>
    %11 = vector.broadcast %10 : vector<1x1x32xf32> to vector<2x8x32xf32>
    %12 = arith.mulf %9, %11 : vector<2x8x32xf32>
    %cst_8 = arith.constant dense<0.000000e+00> : vector<2x8xf32>
    %13 = vector.multi_reduction <add>, %12, %cst_8 [2] : vector<2x8x32xf32> to vector<2x8xf32>
    %cst_9 = arith.constant dense<0xFF800000> : vector<2xf32>
    %14 = vector.multi_reduction <maximumf>, %13, %cst_9 [1] : vector<2x8xf32> to vector<2xf32>
    %15 = vector.shape_cast %14 : vector<2xf32> to vector<2x1xf32>
    %16 = vector.broadcast %15 : vector<2x1xf32> to vector<2x8xf32>
    %17 = arith.subf %13, %16 : vector<2x8xf32>
    %18 = math.exp %17 : vector<2x8xf32>
    %cst_10 = arith.constant dense<0.000000e+00> : vector<2xf32>
    %19 = vector.multi_reduction <add>, %18, %cst_10 [1] : vector<2x8xf32> to vector<2xf32>
    %20 = vector.shape_cast %19 : vector<2xf32> to vector<2x1xf32>
    %21 = vector.broadcast %20 : vector<2x1xf32> to vector<2x8xf32>
    %22 = arith.divf %18, %21 : vector<2x8xf32>
    %23 = vector.shape_cast %22 : vector<2x8xf32> to vector<2x1x8xf32>
    "tpu.trace_start"() <{level = 10 : i32, message = "bql,blh->bqh"}> : () -> ()
    %cst_11 = arith.constant dense<0.000000e+00> : vector<2x1x32xf32>
    %24 = tpu.matmul %23, %0, %cst_11 {dimension_numbers = #tpu.dot_dimension_numbers<[2], [1], [1], [2], [0, 0, 0, 1, 1, 2], [0], [0]>} : vector<2x1x8xf32>, vector<2x8x32xf32>, vector<2x1x32xf32> -> vector<2x1x32xf32>
    "tpu.trace_stop"() : () -> ()
    %25 = vector.shape_cast %24 : vector<2x1x32xf32> to vector<2x32xf32>
    %c0_12 = arith.constant 0 : index
    %c0_13 = arith.constant 0 : index
    %26 = vector.load %arg5[%c0_12, %c0_13] : memref<2x32xf32, #tpu.memory_space<vmem>>, vector<2x32xf32>
    tpu.vector_store %arg5[%c0_12, %c0_13], %25 {strides = array<i32>} : memref<2x32xf32, #tpu.memory_space<vmem>>, vector<2x32xf32>,
    %c0_14 = arith.constant 0 : index
    %c0_15 = arith.constant 0 : index
    %27 = vector.load %arg6[%c0_14, %c0_15] : memref<2x8xf32, #tpu.memory_space<vmem>>, vector<2x8xf32>
    tpu.vector_store %arg6[%c0_14, %c0_15], %22 {strides = array<i32>} : memref<2x8xf32, #tpu.memory_space<vmem>>, vector<2x8xf32>,
    return
  }
  func.func @transform_0(%arg0: i32) -> (i32, i32, i32) {
    %c0_i32 = arith.constant 0 : i32
    %c0_i32_0 = arith.constant 0 : i32
    %c0_i32_1 = arith.constant 0 : i32
    return %arg0, %c0_i32, %c0_i32_0 : i32, i32, i32
  }
  func.func @transform_1(%arg0: i32) -> (i32, i32) {
    %c0_i32 = arith.constant 0 : i32
    %c0_i32_0 = arith.constant 0 : i32
    %c0_i32_1 = arith.constant 0 : i32
    return %c0_i32, %c0_i32_0 : i32, i32
  }
  func.func @transform_2(%arg0: i32) -> (i32, i32) {
    %c0_i32 = arith.constant 0 : i32
    %c0_i32_0 = arith.constant 0 : i32
    %c0_i32_1 = arith.constant 0 : i32
    return %c0_i32, %c0_i32_0 : i32, i32
  }
  func.func @transform_3(%arg0: i32) -> (i32, i32) {
    %c0_i32 = arith.constant 0 : i32
    %c0_i32_0 = arith.constant 0 : i32
    %c0_i32_1 = arith.constant 0 : i32
    return %c0_i32, %c0_i32_0 : i32, i32
  }
  func.func @transform_4(%arg0: i32) -> (i32, i32) {
    %c0_i32 = arith.constant 0 : i32
    %c0_i32_0 = arith.constant 0 : i32
    return %arg0, %c0_i32 : i32, i32
  }
  func.func @transform_5(%arg0: i32) -> (i32, i32) {
    %c0_i32 = arith.constant 0 : i32
    %c0_i32_0 = arith.constant 0 : i32
    return %arg0, %c0_i32 : i32, i32
  }
}

</mosaic_0001>

<llo_original>
// kernel: additive_attention.1
$region0: #{additive_attention.1}
  #allocation0 [shape = 'u32[]', space=smem, size = 0x4, offset = 0x4, fixed_abs, tag = 'smem constant byte address 0x4 - core index']
  #allocation1 [shape = 'u32[144,128]{1,0:T(1,128)}', space=vmem, size = 0x12000, scoped, tag = 'internal scratch']
  %s0 = inlined_call_operand.vmem [shape: f32[2,8,32], index: 0, kind: input, shape index: {}]
  %s1 = inlined_call_operand.vmem [shape: f32[32,32], index: 1, kind: input, shape index: {}]
  %s2 = inlined_call_operand.vmem [shape: f32[1,32], index: 2, kind: input, shape index: {}]
  %s3 = inlined_call_operand.vmem [shape: f32[1,32], index: 3, kind: input, shape index: {}]
  %s4 = inlined_call_operand.hbm [shape: f32[2,32], index: 4, kind: output, shape index: {0}]
  %s5 = inlined_call_operand.hbm [shape: f32[2,8], index: 5, kind: output, shape index: {1}]
  %6 = xla_tuple %s4, %s5
  %s7 = sld [smem:[#allocation0]]
  $region34: #{additive_attention.1} parent=0
    _
  %s9 = ssub.s32 1, %s7
  %s10 = scalar_select 0, %s9, %s7
  $region1: #{additive_attention.1} parent=0
    #allocation2 [shape = 'u8[1024]{0}', space=vmem, size = 0x400, scoped, tag = 'output window, operand 0, single buffered']
    #allocation3 [shape = 's32[1]{0}', space=sflag, size = 0x4, scoped, tag = 'scoped memory for additive_attention.1']
    #allocation4 [shape = 'u8[1024]{0}', space=vmem, size = 0x400, scoped, tag = 'output window, operand 1, single buffered']
    #allocation5 [shape = 's32[1]{0}', space=sflag, size = 0x4, scoped, tag = 'scoped memory for additive_attention.1']
    %11 = vsyncpa [#allocation3], 0
    %12 = vsyncpa [#allocation5], 0
    // Predicated region
    $region2: #{additive_attention.1} parent=1 // pred_check
      _
    $region3: #{additive_attention.1} parent=1 // pred_check_branch
      %14 = sbr.rel (0) target = $region5
    $region4: #{additive_attention.1} parent=1 // pred_region
      _
    $region5: #{additive_attention.1} parent=1 // pred_fallthru
      _
    // Predicated region
    $region6: #{additive_attention.1} parent=1 // pred_check
      _
    $region7: #{additive_attention.1} parent=1 // pred_check_branch
      %16 = sbr.rel (0) target = $region9
    $region8: #{additive_attention.1} parent=1 // pred_region
      _
    $region9: #{additive_attention.1} parent=1 // pred_fallthru
      _
    // Predicated region
    $region10: #{additive_attention.1} parent=1 // pred_check
      _
    $region11: #{additive_attention.1} parent=1 // pred_check_branch
      %18 = sbr.rel (0) target = $region13
    $region12: #{additive_attention.1} parent=1 // pred_region
      _
    $region13: #{additive_attention.1} parent=1 // pred_fallthru
      _
    // Predicated region
    $region14: #{additive_attention.1} parent=1 // pred_check
      _
    $region15: #{additive_attention.1} parent=1 // pred_check_branch
      %20 = sbr.rel (0) target = $region17
    $region16: #{additive_attention.1} parent=1 // pred_region
      _
    $region17: #{additive_attention.1} parent=1 // pred_fallthru
      _
    %v21 = vld [vmem:[%s0] sm:$0xff]
    %v22 = vld [vmem:[%s0 + $0x8] sm:$0xff]
    %v23 = vld [vmem:[%s1] sm:$0xff]
    %v24 = vld [vmem:[%s1 + $0x8] sm:$0xff]
    %v25 = vld [vmem:[%s1 + $0x10] sm:$0xff]
    %v26 = vld [vmem:[%s1 + $0x18] sm:$0xff]
    %v27 = vld [vmem:[%s2] sm:$0x1]
    %v28 = vld [vmem:[%s3] sm:$0x1]
    %v30 = vlaneseq
    %v31 = vshrl.u32 %v30, 7
    %v32 = vsub.s32 0, %v31
    %v33 = vrot.slane %v27, %v32
    %vm35 = vcmask 261120
    %v37 = vsel %vm35, %v21, 0
    %v40 = vsel %vm35, %v22, 0
    %42 = vmatprep.subr.mxu0 0.0
    %43 = vmatpush1.msra.mxu0 0.0
    %44 = vmatprep.subr.mxu0 0.0
    %45 = vmatpush1.msra.mxu0 0.0
    %46 = vmatprep.subr.mxu0 0.0
    %47 = vmatpush1.msra.mxu0 0.0
    %48 = vmatprep.subr.mxu0 0.0
    %49 = vmatpush1.msra.mxu0 0.0
    %50 = vmatprep.subr.mxu0 0.0
    %51 = vmatpush1.msra.mxu0 0.0
    %52 = vmatprep.subr.mxu0 0.0
    %53 = vmatpush1.msra.mxu0 0.0
    %54 = vmatprep.subr.mxu0 0.0
    %55 = vmatpush1.msra.mxu0 0.0
    %56 = vmatprep.subr.mxu0 0.0
    %57 = vmatpush1.msra.mxu0 0.0
    %58 = vmatprep.subr.mxu0 0.0
    %59 = vmatpush1.msra.mxu0 0.0
    %60 = vmatprep.subr.mxu0 0.0
    %61 = vmatpush1.msra.mxu0 0.0
    %62 = vmatprep.subr.mxu0 0.0
    %63 = vmatpush1.msra.mxu0 0.0
    %64 = vmatprep.subr.mxu0 0.0
    %65 = vmatpush1.msra.mxu0 0.0
    %66 = vmatprep.subr.mxu0 0.0
    %67 = vmatpush1.msra.mxu0 %v26
    %68 = vmatprep.subr.mxu0 0.0
    %69 = vmatpush1.msra.mxu0 %v25
    %70 = vmatprep.subr.mxu0 0.0
    %71 = vmatpush1.msra.mxu0 %v24
    %72 = vmatprep.subr.mxu0 0.0
    %73 = vmatpush1.msra.mxu0 %v23
    %74 = vmatprep.subr.mxu0 0.0
    %75 = vmatpush2.msra.mxu0 0.0
    %76 = vmatprep.subr.mxu0 0.0
    %77 = vmatpush2.msra.mxu0 0.0
    %78 = vmatprep.subr.mxu0 0.0
    %79 = vmatpush2.msra.mxu0 0.0
    %80 = vmatprep.subr.mxu0 0.0
    %81 = vmatpush2.msra.mxu0 0.0
    %82 = vmatprep.subr.mxu0 0.0
    %83 = vmatpush2.msra.mxu0 0.0
    %84 = vmatprep.subr.mxu0 0.0
    %85 = vmatpush2.msra.mxu0 0.0
    %86 = vmatprep.subr.mxu0 0.0
    %87 = vmatpush2.msra.mxu0 0.0
    %88 = vmatprep.subr.mxu0 0.0
    %89 = vmatpush2.msra.mxu0 0.0
    %90 = vmatprep.subr.mxu0 0.0
    %91 = vmatpush2.msra.mxu0 0.0
    %92 = vmatprep.subr.mxu0 0.0
    %93 = vmatpush2.msra.mxu0 0.0
    %94 = vmatprep.subr.mxu0 0.0
    %95 = vmatpush2.msra.mxu0 0.0
    %96 = vmatprep.subr.mxu0 0.0
    %97 = vmatpush2.msra.mxu0 0.0
    %98 = vmatprep.subr.mxu0 0.0
    %99 = vmatpush2.msra.mxu0 0.0
    %100 = vmatprep.subr.mxu0 0.0
    %101 = vmatpush2.msra.mxu0 0.0
    %102 = vmatprep.subr.mxu0 0.0
    %103 = vmatpush2.msra.mxu0 0.0
    %104 = vmatprep.subr.mxu0 0.0
    %105 = vmatpush2.msra.mxu0 0.0
    %106 = vmatprep.mubr.f32.mxu0 0.0
    %107 = vmatmul.mubr.f32.gmra.mxu0 %v37
    %v108 = vpop.f32.mrf.mxu0
    %v109 = vadd.f32 %v33, %v108
    %v110 = vpop.f32.mrf.mxu0
    %111 = vmatprep.mubr.f32.mxu0 0.0
    %112 = vmatmul.mubr.f32.gmra.mxu0 %v40
    %v113 = vpop.f32.mrf.mxu0
    %v114 = vadd.f32 %v33, %v113
    %v115 = vpop.f32.mrf.mxu0
    %116 = vdwg.mxu0
    %v117 = vtanh.pop %v109
    %v118 = vtanh.pop %v114
    %v120 = vlaneseq
    %v121 = vshrl.u32 %v120, 7
    %v122 = vsub.s32 0, %v121
    %v123 = vrot.slane %v28, %v122
    %v125 = vmul.f32 %v117, %v123
    %v126 = vmul.f32 %v118, %v123
    %v127 = vsel %vm35, %v125, 0.0
    %128 = vadd.xlane.f32.xlu0 %v127
    %v129 = vpop.xlane.xlu0 %128
    %v130 = vsel %vm35, %v126, 0.0
    %131 = vadd.xlane.f32.xlu0 %v130
    %v132 = vpop.xlane.xlu0 %131
    %v135 = vlaneseq
    %v136 = vand.u32 %v135, 127
    %v137 = vlaneseq
    %v138 = vshrl.u32 %v137, 7
    %v139 = vsub.s32 %v136, %v138
    %v140 = vrot.slane %v129, %v139
    %v141 = vlaneseq
    %v142 = vshrl.u32 %v141, 7
    %v143 = vsub.s32 %v136, %v142
    %v144 = vrot.slane %v132, %v143
    %vm145 = vcmask 1041409
    %v146 = vsel %vm145, %v144, %v140
    %vm148 = vcmask 58368
    %v149 = vsel %vm148, %v146, -inf
    %150 = vmax.xlane.f32.xlu0 %v149
    %v151 = vpop.xlane.xlu0 %150
    %v153 = vlaneseq
    %v154 = vshrl.u32 %v153, 7
    %v155 = vsub.s32 0, %v154
    %v156 = vrot.slane %v151, %v155
    %v157 = vlaneseq
    %v158 = vshrl.u32 %v157, 7
    %v159 = vsub.s32 1, %v158
    %v160 = vrot.slane %v151, %v159
    %v163 = vsub.f32 %v129, %v156
    %v164 = vsub.f32 %v132, %v160
    %v165 = vmul.f32 %v163, 1.442695
    %v166 = vpow.pop %v165
    %v167 = vmul.f32 %v164, 1.442695
    %v168 = vpow.pop %v167
    %171 = vset.pattern.permute.xlu0 0
    %172 = vperm.xlu0 %171, %v166
    %v173 = vpop.permute.xlu0 %172
    %174 = vset.pattern.permute.xlu0 0
    %175 = vperm.xlu0 %174, %v168
    %v176 = vpop.permute.xlu0 %175
    %v177 = vlaneseq
    %v178 = vshrl.u32 %v177, 7
    %v179 = vsub.s32 %v136, %v178
    %v180 = vrot.slane %v173, %v179
    %v181 = vlaneseq
    %v182 = vshrl.u32 %v181, 7
    %v183 = vsub.s32 %v136, %v182
    %v184 = vrot.slane %v176, %v183
    %v185 = vsel %vm145, %v184, %v180
    %v187 = vsel %vm148, %v185, 0.0
    %188 = vadd.xlane.f32.xlu0 %v187
    %v189 = vpop.xlane.xlu0 %188
    %v191 = vlaneseq
    %v192 = vshrl.u32 %v191, 7
    %v193 = vsub.s32 0, %v192
    %v194 = vrot.slane %v189, %v193
    %v195 = vlaneseq
    %v196 = vshrl.u32 %v195, 7
    %v197 = vsub.s32 1, %v196
    %v198 = vrot.slane %v189, %v197
    %v201 = vrcp.pop %v194
    %v202 = vmul.f32 %v166, %v201
    %v203 = vrcp.pop %v198
    %v204 = vmul.f32 %v168, %v203
    %206 = vset.pattern.permute.xlu0 0
    %207 = vperm.xlu0 %206, %v202
    %v208 = vpop.permute.xlu0 %207
    %v209 = vlaneseq
    %v210 = vshrl.u32 %v209, 7
    %v211 = vsub.s32 %v136, %v210
    %v212 = vrot.slane %v208, %v211
    %vm213 = vcmask 64512
    %v214 = vsel %vm213, %v212, 0
    %216 = vmatprep.subr.mxu0 0.0
    %217 = vmatpush1.msra.mxu0 0.0
    %218 = vmatprep.subr.mxu0 0.0
    %219 = vmatpush1.msra.mxu0 0.0
    %220 = vmatprep.subr.mxu0 0.0
    %221 = vmatpush1.msra.mxu0 0.0
    %222 = vmatprep.subr.mxu0 0.0
    %223 = vmatpush1.msra.mxu0 0.0
    %224 = vmatprep.subr.mxu0 0.0
    %225 = vmatpush1.msra.mxu0 0.0
    %226 = vmatprep.subr.mxu0 0.0
    %227 = vmatpush1.msra.mxu0 0.0
    %228 = vmatprep.subr.mxu0 0.0
    %229 = vmatpush1.msra.mxu0 0.0
    %230 = vmatprep.subr.mxu0 0.0
    %231 = vmatpush1.msra.mxu0 0.0
    %232 = vmatprep.subr.mxu0 0.0
    %233 = vmatpush1.msra.mxu0 0.0
    %234 = vmatprep.subr.mxu0 0.0
    %235 = vmatpush1.msra.mxu0 0.0
    %236 = vmatprep.subr.mxu0 0.0
    %237 = vmatpush1.msra.mxu0 0.0
    %238 = vmatprep.subr.mxu0 0.0
    %239 = vmatpush1.msra.mxu0 0.0
    %240 = vmatprep.subr.mxu0 0.0
    %241 = vmatpush1.msra.mxu0 0.0
    %242 = vmatprep.subr.mxu0 0.0
    %243 = vmatpush1.msra.mxu0 0.0
    %244 = vmatprep.subr.mxu0 0.0
    %245 = vmatpush1.msra.mxu0 0.0
    %246 = vmatprep.subr.mxu0 0.0
    %247 = vmatpush1.msra.mxu0 %v21
    %248 = vmatprep.subr.mxu0 0.0
    %249 = vmatpush2.msra.mxu0 0.0
    %250 = vmatprep.subr.mxu0 0.0
    %251 = vmatpush2.msra.mxu0 0.0
    %252 = vmatprep.subr.mxu0 0.0
    %253 = vmatpush2.msra.mxu0 0.0
    %254 = vmatprep.subr.mxu0 0.0
    %255 = vmatpush2.msra.mxu0 0.0
    %256 = vmatprep.subr.mxu0 0.0
    %257 = vmatpush2.msra.mxu0 0.0
    %258 = vmatprep.subr.mxu0 0.0
    %259 = vmatpush2.msra.mxu0 0.0
    %260 = vmatprep.subr.mxu0 0.0
    %261 = vmatpush2.msra.mxu0 0.0
    %262 = vmatprep.subr.mxu0 0.0
    %263 = vmatpush2.msra.mxu0 0.0
    %264 = vmatprep.subr.mxu0 0.0
    %265 = vmatpush2.msra.mxu0 0.0
    %266 = vmatprep.subr.mxu0 0.0
    %267 = vmatpush2.msra.mxu0 0.0
    %268 = vmatprep.subr.mxu0 0.0
    %269 = vmatpush2.msra.mxu0 0.0
    %270 = vmatprep.subr.mxu0 0.0
    %271 = vmatpush2.msra.mxu0 0.0
    %272 = vmatprep.subr.mxu0 0.0
    %273 = vmatpush2.msra.mxu0 0.0
    %274 = vmatprep.subr.mxu0 0.0
    %275 = vmatpush2.msra.mxu0 0.0
    %276 = vmatprep.subr.mxu0 0.0
    %277 = vmatpush2.msra.mxu0 0.0
    %278 = vmatprep.subr.mxu0 0.0
    %279 = vmatpush2.msra.mxu0 0.0
    %280 = vmatprep.mubr.f32.mxu0 0.0
    %281 = vmatmul.mubr.f32.gmra.mxu0 %v214
    %v282 = vpop.f32.mrf.mxu0
    %v283 = vadd.f32 0.0, %v282
    %v284 = vpop.f32.mrf.mxu0
    %285 = vdwg.mxu0
    %287 = vset.pattern.permute.xlu0 0
    %288 = vperm.xlu0 %287, %v204
    %v289 = vpop.permute.xlu0 %288
    %v290 = vlaneseq
    %v291 = vshrl.u32 %v290, 7
    %v292 = vsub.s32 %v136, %v291
    %v293 = vrot.slane %v289, %v292
    %v294 = vsel %vm213, %v293, 0
    %296 = vmatprep.subr.mxu0 0.0
    %297 = vmatpush1.msra.mxu0 0.0
    %298 = vmatprep.subr.mxu0 0.0
    %299 = vmatpush1.msra.mxu0 0.0
    %300 = vmatprep.subr.mxu0 0.0
    %301 = vmatpush1.msra.mxu0 0.0
    %302 = vmatprep.subr.mxu0 0.0
    %303 = vmatpush1.msra.mxu0 0.0
    %304 = vmatprep.subr.mxu0 0.0
    %305 = vmatpush1.msra.mxu0 0.0
    %306 = vmatprep.subr.mxu0 0.0
    %307 = vmatpush1.msra.mxu0 0.0
    %308 = vmatprep.subr.mxu0 0.0
    %309 = vmatpush1.msra.mxu0 0.0
    %310 = vmatprep.subr.mxu0 0.0
    %311 = vmatpush1.msra.mxu0 0.0
    %312 = vmatprep.subr.mxu0 0.0
    %313 = vmatpush1.msra.mxu0 0.0
    %314 = vmatprep.subr.mxu0 0.0
    %315 = vmatpush1.msra.mxu0 0.0
    %316 = vmatprep.subr.mxu0 0.0
    %317 = vmatpush1.msra.mxu0 0.0
    %318 = vmatprep.subr.mxu0 0.0
    %319 = vmatpush1.msra.mxu0 0.0
    %320 = vmatprep.subr.mxu0 0.0
    %321 = vmatpush1.msra.mxu0 0.0
    %322 = vmatprep.subr.mxu0 0.0
    %323 = vmatpush1.msra.mxu0 0.0
    %324 = vmatprep.subr.mxu0 0.0
    %325 = vmatpush1.msra.mxu0 0.0
    %326 = vmatprep.subr.mxu0 0.0
    %327 = vmatpush1.msra.mxu0 %v22
    %328 = vmatprep.subr.mxu0 0.0
    %329 = vmatpush2.msra.mxu0 0.0
    %330 = vmatprep.subr.mxu0 0.0
    %331 = vmatpush2.msra.mxu0 0.0
    %332 = vmatprep.subr.mxu0 0.0
    %333 = vmatpush2.msra.mxu0 0.0
    %334 = vmatprep.subr.mxu0 0.0
    %335 = vmatpush2.msra.mxu0 0.0
    %336 = vmatprep.subr.mxu0 0.0
    %337 = vmatpush2.msra.mxu0 0.0
    %338 = vmatprep.subr.mxu0 0.0
    %339 = vmatpush2.msra.mxu0 0.0
    %340 = vmatprep.subr.mxu0 0.0
    %341 = vmatpush2.msra.mxu0 0.0
    %342 = vmatprep.subr.mxu0 0.0
    %343 = vmatpush2.msra.mxu0 0.0
    %344 = vmatprep.subr.mxu0 0.0
    %345 = vmatpush2.msra.mxu0 0.0
    %346 = vmatprep.subr.mxu0 0.0
    %347 = vmatpush2.msra.mxu0 0.0
    %348 = vmatprep.subr.mxu0 0.0
    %349 = vmatpush2.msra.mxu0 0.0
    %350 = vmatprep.subr.mxu0 0.0
    %351 = vmatpush2.msra.mxu0 0.0
    %352 = vmatprep.subr.mxu0 0.0
    %353 = vmatpush2.msra.mxu0 0.0
    %354 = vmatprep.subr.mxu0 0.0
    %355 = vmatpush2.msra.mxu0 0.0
    %356 = vmatprep.subr.mxu0 0.0
    %357 = vmatpush2.msra.mxu0 0.0
    %358 = vmatprep.subr.mxu0 0.0
    %359 = vmatpush2.msra.mxu0 0.0
    %360 = vmatprep.mubr.f32.mxu0 0.0
    %361 = vmatmul.mubr.f32.gmra.mxu0 %v294
    %v362 = vpop.f32.mrf.mxu0
    %v363 = vadd.f32 0.0, %v362
    %v364 = vpop.f32.mrf.mxu0
    %365 = vdwg.mxu0
    %v368 = vrot.slane %v363, 7
    %v369 = vsel %vm145, %v368, %v283
    %vm371 = vcmask 254976
    %372 = vst.msk [vmem:[#allocation2] sm:$0x3] %vm371, %v369
    %v373 = vsel %vm145, %v293, %v212
    %375 = vst.msk [vmem:[#allocation4] sm:$0x3] %vm148, %v373
    // Predicated region
    $region18: #{additive_attention.1} parent=1 // pred_check
      _
    $region19: #{additive_attention.1} parent=1 // pred_check_branch
      %377 = sbr.rel (0) target = $region21
    $region20: #{additive_attention.1} parent=1 // pred_region
      %s379 = ssub.s32 32, 32
      %380 = vsyncadd [#allocation3], %s379
      %s382 = sshll.u32 [#allocation2], 4
      %s383 = int_to_ptr.vmem [resolvable:$true] %s382
      %385 = dma.vmem_to_hbm [thread:$0]  %s383, 32, %s4, [#allocation3]
    $region21: #{additive_attention.1} parent=1 // pred_fallthru
      _
    // Predicated region
    $region22: #{additive_attention.1} parent=1 // pred_check
      _
    $region23: #{additive_attention.1} parent=1 // pred_check_branch
      %387 = sbr.rel (0) target = $region25
    $region24: #{additive_attention.1} parent=1 // pred_region
      %s389 = ssub.s32 32, 32
      %390 = vsyncadd [#allocation5], %s389
      %s392 = sshll.u32 [#allocation4], 4
      %s393 = int_to_ptr.vmem [resolvable:$true] %s392
      %395 = dma.vmem_to_hbm [thread:$0]  %s393, 32, %s5, [#allocation5]
    $region25: #{additive_attention.1} parent=1 // pred_fallthru
      _
    // Predicated region
    $region26: #{additive_attention.1} parent=1 // pred_check
      _
    $region27: #{additive_attention.1} parent=1 // pred_check_branch
      %397 = sbr.rel (0) target = $region29
    $region28: #{additive_attention.1} parent=1 // pred_region
      %398 = dma.done [#allocation3], 32
    $region29: #{additive_attention.1} parent=1 // pred_fallthru
      _
    // Predicated region
    $region30: #{additive_attention.1} parent=1 // pred_check
      _
    $region31: #{additive_attention.1} parent=1 // pred_check_branch
      %400 = sbr.rel (0) target = $region33
    $region32: #{additive_attention.1} parent=1 // pred_region
      %401 = dma.done [#allocation5], 32
    $region33: #{additive_attention.1} parent=1 // pred_fallthru
      _
    %402 = vsyncpa [#allocation3], 1
    %403 = vsyncpa [#allocation5], 1

</llo_original>
